<compile_context>
chip_gen: v7x
topology: tpu7x:2x2x1
jax: 0.10.0
libtpu: 0.0.40
codegen_flags: <defaults>
</compile_context>

<pallas_src>
import jax
import jax.numpy as jnp
from jax.experimental import pallas as pl
from jax.experimental.pallas import tpu as pltpu


def _bce_loss_kernel(pos_ref, neg_ref, out_ref):
    # Cast on the loaded tile (inputs may be bf16); all math in f32.
    pos = pos_ref[...].astype(jnp.float32)          # (TB, P)
    neg = neg_ref[...].astype(jnp.float32)          # (TB, N)

    # ---- positive term: logsigmoid, nan_to_num, masked mean over last axis ----
    # logsigmoid(x) = min(x, 0) - log1p(exp(-|x|))  (numerically stable, <= 0)
    logsig = jnp.minimum(pos, 0.0) - jnp.log1p(jnp.exp(-jnp.abs(pos)))

    # torch.nan_to_num(..., nan=0.0): nan -> 0, -inf -> float32 min.
    # (+inf branch is dead because logsigmoid <= 0, so it is not emitted.)
    f32_min = jnp.float32(jnp.finfo(jnp.float32).min)
    logsig = jnp.where(jnp.isnan(logsig), jnp.float32(0.0), logsig)
    logsig = jnp.where(logsig == -jnp.inf, f32_min, logsig)

    notpadnum = jnp.sum(
        jnp.logical_not(jnp.isinf(pos)).astype(jnp.float32), axis=-1, keepdims=True
    )                                                # (TB, 1)

    # approx reciprocal (EUP vrcp) + one Newton-Raphson refinement (VPU ops).
    inv_npn = pl.reciprocal(notpadnum, approx=True)
    inv_npn = inv_npn * (jnp.float32(2.0) - notpadnum * inv_npn)
    output = jnp.sum(logsig, axis=-1, keepdims=True) * inv_npn        # (TB, 1)

    # ---- negative term: softplus * uniform softmax weight, summed over axis -1 ----
    softplus_neg = jnp.maximum(neg, 0.0) + jnp.log1p(jnp.exp(-jnp.abs(neg)))
    inv_n = jnp.float32(1.0 / neg.shape[-1])
    neg_term = jnp.sum(softplus_neg, axis=-1, keepdims=True) * inv_n  # (TB, 1)

    # Per-row partial; batch mean happens in the wrapper.
    out_ref[...] = neg_term - output                 # (TB, 1)


def binary_cross_entropy_loss(label, pos_score, log_pos_prob, neg_score,
                              log_neg_prob, dns=False, max_rows_per_tile=512):
    """Pallas implementation of BinaryCrossEntropyLoss.forward.

    Only the `not dns or pos_score.dim() > 1` branch is implemented (the dns
    1-D branch in the reference calls softplus on a (values, indices) tuple and
    is not executable as written).
    """
    # TODO(synk): dns=True with 1-D pos_score is broken in the PyTorch
    # reference (softplus of a torch.max tuple); not reproduced here.
    # TODO(synk): if P/N stay tiny (<128) in production, feed (P, B)/(N, B)
    # transposed tensors so the batch maps to the 128-lane axis for full
    # vector width; kept un-transposed here to avoid an extra HBM copy.
    del label, log_pos_prob, log_neg_prob  # unused by this branch (matches torch)

    pos_score = jnp.asarray(pos_score)     # no forced upcast; bf16 stays bf16
    neg_score = jnp.asarray(neg_score)
    B, P = pos_score.shape
    Bn, N = neg_score.shape
    assert B == Bn, "pos_score and neg_score must share the batch dimension"

    # Batch tile: keep 2 double-buffered input tiles within ~16 MiB of VMEM so
    # the default scoped limits on every generation (incl. v7x) are respected.
    itemsize = jnp.dtype(pos_score.dtype).itemsize
    bytes_per_row = 2 * (P + N) * itemsize          # x2 for double buffering
    vmem_budget = 16 * 1024 * 1024
    tb_cap = max(8, min(int(max_rows_per_tile), vmem_budget // max(bytes_per_row, 1)))
    tb_cap = (tb_cap // 8) * 8                      # sublane-aligned tile rows
    TB = B if B <= tb_cap else tb_cap
    num_tiles = pl.cdiv(B, TB)
    B_pad = num_tiles * TB

    per_row = pl.pallas_call(
        _bce_loss_kernel,
        out_shape=jax.ShapeDtypeStruct((B_pad, 1), jnp.float32),
        grid=(num_tiles,),
        in_specs=[
            pl.BlockSpec((TB, P), lambda i: (i, 0)),
            pl.BlockSpec((TB, N), lambda i: (i, 0)),
        ],
        out_specs=pl.BlockSpec((TB, 1), lambda i: (i, 0)),
        compiler_params=pltpu.CompilerParams(
            dimension_semantics=("parallel",)   # independent tiles -> megacore shard
        ),
    )(pos_score, neg_score)

    # Drop padded edge rows (garbage from the partial block) and take the mean.
    return jnp.sum(per_row[:B, 0]) / jnp.float32(B)


def _reference_jax(pos_score, neg_score):
    """Plain-JAX reference for sanity checking the kernel."""
    pos_score = pos_score.astype(jnp.float32)
    neg_score = neg_score.astype(jnp.float32)
    logsig = jax.nn.log_sigmoid(pos_score)
    logsig = jnp.nan_to_num(logsig, nan=0.0)  # same +-inf defaults as torch
    notpadnum = jnp.sum(jnp.logical_not(jnp.isinf(pos_score)).astype(jnp.float32), -1)
    output = jnp.sum(logsig, -1) / notpadnum
    weight = jax.nn.softmax(jnp.ones_like(neg_score), -1)
    neg_term = jnp.sum(jax.nn.softplus(neg_score) * weight, -1)
    return jnp.mean(-output + neg_term)


if __name__ == "__main__":
    key = jax.random.PRNGKey(0)
    k1, k2, k3, k4, k5 = jax.random.split(key, 5)

    B, P, N = 8, 8, 16  # batch, positives per row, negatives per row
    label = jax.random.uniform(k1, (B, P), jnp.float32)          # unused in this branch
    pos_score = jax.random.normal(k2, (B, P), jnp.float32)
    # Mark one positive as padding (+inf) to exercise the notpadnum path.
    pos_score = pos_score.at[0, P - 1].set(jnp.inf)
    log_pos_prob = jax.random.normal(k3, (B, P), jnp.float32)    # unused in this branch
    neg_score = jax.random.normal(k4, (B, N), jnp.float32)
    log_neg_prob = jax.random.normal(k5, (B, N), jnp.float32)    # unused in this branch

    # Single-tile path.
    loss = binary_cross_entropy_loss(
        label, pos_score, log_pos_prob, neg_score, log_neg_prob, dns=False
    )
    loss = jax.block_until_ready(loss)
    ref = _reference_jax(pos_score, neg_score)
    assert jnp.allclose(loss, ref, rtol=1e-5, atol=1e-5), (loss, ref)

    # Multi-tile + padded-edge-block path (B=20 with 8-row tiles -> 3 tiles).
    B2 = 20
    k6, k7 = jax.random.split(k5)
    pos2 = jax.random.normal(k6, (B2, P), jnp.float32)
    neg2 = jax.random.normal(k7, (B2, N), jnp.float32)
    loss2 = binary_cross_entropy_loss(
        None, pos2, None, neg2, None, dns=False, max_rows_per_tile=8
    )
    loss2 = jax.block_until_ready(loss2)
    ref2 = _reference_jax(pos2, neg2)
    assert jnp.allclose(loss2, ref2, rtol=1e-5, atol=1e-5), (loss2, ref2)

    print("KERNEL_OK")
</pallas_src>

<mosaic_0001>
module attributes {stable_mosaic.version = 11 : i64} {
  func.func @_bce_loss_kernel(%arg0: i32, %arg1: memref<8x8xf32, #tpu.memory_space<vmem>>, %arg2: memref<8x16xf32, #tpu.memory_space<vmem>>, %arg3: memref<8x1xf32, #tpu.memory_space<vmem>>) attributes {dimension_semantics = [#tpu.dimension_semantics<parallel>], iteration_bounds = array<i64: 1>, scalar_prefetch = 0 : i64, scratch_operands = 0 : i64, tpu.core_type = #tpu.core_type<tc>, window_params = [{transform_indices = @transform_0, window_bounds = array<i64: 8, 8>}, {transform_indices = @transform_1, window_bounds = array<i64: 8, 16>}, {transform_indices = @transform_2, window_bounds = array<i64: 8, 1>}]} {
    %c0 = arith.constant 0 : index
    %c0_0 = arith.constant 0 : index
    %0 = vector.load %arg1[%c0, %c0_0] : memref<8x8xf32, #tpu.memory_space<vmem>>, vector<8x8xf32>
    %c0_1 = arith.constant 0 : index
    %c0_2 = arith.constant 0 : index
    %1 = vector.load %arg2[%c0_1, %c0_2] : memref<8x16xf32, #tpu.memory_space<vmem>>, vector<8x16xf32>
    %cst = arith.constant 0.000000e+00 : f32
    %2 = vector.broadcast %cst : f32 to vector<8x8xf32>
    %3 = arith.minimumf %0, %2 : vector<8x8xf32>
    %4 = math.absf %0 : vector<8x8xf32>
    %cst_3 = arith.constant 0.000000e+00 : f32
    %5 = vector.broadcast %cst_3 : f32 to vector<8x8xf32>
    %6 = arith.subf %5, %4 : vector<8x8xf32>
    %7 = math.exp %6 : vector<8x8xf32>
    %8 = math.log1p %7 : vector<8x8xf32>
    %9 = arith.subf %3, %8 : vector<8x8xf32>
    %10 = arith.cmpf one, %9, %9 : vector<8x8xf32>
    %cst_4 = arith.constant 0.000000e+00 : f32
    %11 = vector.broadcast %cst_4 : f32 to vector<8x8xf32>
    %12 = arith.select %10, %11, %9 : vector<8x8xi1>, vector<8x8xf32>
    %cst_5 = arith.constant 0xFF800000 : f32
    %13 = vector.broadcast %cst_5 : f32 to vector<8x8xf32>
    %14 = arith.cmpf oeq, %12, %13 : vector<8x8xf32>
    %cst_6 = arith.constant -3.40282347E+38 : f32
    %15 = vector.broadcast %cst_6 : f32 to vector<8x8xf32>
    %16 = arith.select %14, %15, %12 : vector<8x8xi1>, vector<8x8xf32>
    %17 = math.absf %0 : vector<8x8xf32>
    %cst_7 = arith.constant 0x7F800000 : f32
    %18 = vector.broadcast %cst_7 : f32 to vector<8x8xf32>
    %19 = arith.cmpf oeq, %17, %18 : vector<8x8xf32>
    %cst_8 = arith.constant dense<true> : vector<8x8xi1>
    %20 = arith.xori %19, %cst_8 : vector<8x8xi1>
    %21 = arith.extui %20 : vector<8x8xi1> to vector<8x8xi32>
    %22 = arith.sitofp %21 : vector<8x8xi32> to vector<8x8xf32>
    %cst_9 = arith.constant dense<0.000000e+00> : vector<8xf32>
    %23 = vector.multi_reduction <add>, %22, %cst_9 [1] : vector<8x8xf32> to vector<8xf32>
    %24 = vector.shape_cast %23 : vector<8xf32> to vector<8x1xf32>
    %25 = tpu.reciprocal %24 {approx = true} : vector<8x1xf32> -> vector<8x1xf32>
    %26 = arith.mulf %24, %25 : vector<8x1xf32>
    %cst_10 = arith.constant 2.000000e+00 : f32
    %27 = vector.broadcast %cst_10 : f32 to vector<8x1xf32>
    %28 = arith.subf %27, %26 : vector<8x1xf32>
    %29 = arith.mulf %25, %28 : vector<8x1xf32>
    %cst_11 = arith.constant dense<0.000000e+00> : vector<8xf32>
    %30 = vector.multi_reduction <add>, %16, %cst_11 [1] : vector<8x8xf32> to vector<8xf32>
    %31 = vector.shape_cast %30 : vector<8xf32> to vector<8x1xf32>
    %32 = arith.mulf %31, %29 : vector<8x1xf32>
    %cst_12 = arith.constant 0.000000e+00 : f32
    %33 = vector.broadcast %cst_12 : f32 to vector<8x16xf32>
    %34 = arith.maximumf %1, %33 : vector<8x16xf32>
    %35 = math.absf %1 : vector<8x16xf32>
    %cst_13 = arith.constant 0.000000e+00 : f32
    %36 = vector.broadcast %cst_13 : f32 to vector<8x16xf32>
    %37 = arith.subf %36, %35 : vector<8x16xf32>
    %38 = math.exp %37 : vector<8x16xf32>
    %39 = math.log1p %38 : vector<8x16xf32>
    %40 = arith.addf %34, %39 : vector<8x16xf32>
    %cst_14 = arith.constant dense<0.000000e+00> : vector<8xf32>
    %41 = vector.multi_reduction <add>, %40, %cst_14 [1] : vector<8x16xf32> to vector<8xf32>
    %42 = vector.shape_cast %41 : vector<8xf32> to vector<8x1xf32>
    %cst_15 = arith.constant 6.250000e-02 : f32
    %43 = vector.broadcast %cst_15 : f32 to vector<8x1xf32>
    %44 = arith.mulf %42, %43 : vector<8x1xf32>
    %45 = arith.subf %44, %32 : vector<8x1xf32>
    %c0_16 = arith.constant 0 : index
    %c0_17 = arith.constant 0 : index
    %46 = vector.load %arg3[%c0_16, %c0_17] : memref<8x1xf32, #tpu.memory_space<vmem>>, vector<8x1xf32>
    tpu.vector_store %arg3[%c0_16, %c0_17], %45 {strides = array<i32>} : memref<8x1xf32, #tpu.memory_space<vmem>>, vector<8x1xf32>,
    return
  }
  func.func @transform_0(%arg0: i32) -> (i32, i32) {
    %c0_i32 = arith.constant 0 : i32
    %c0_i32_0 = arith.constant 0 : i32
    return %arg0, %c0_i32 : i32, i32
  }
  func.func @transform_1(%arg0: i32) -> (i32, i32) {
    %c0_i32 = arith.constant 0 : i32
    %c0_i32_0 = arith.constant 0 : i32
    return %arg0, %c0_i32 : i32, i32
  }
  func.func @transform_2(%arg0: i32) -> (i32, i32) {
    %c0_i32 = arith.constant 0 : i32
    %c0_i32_0 = arith.constant 0 : i32
    return %arg0, %c0_i32 : i32, i32
  }
}

</mosaic_0001>

<llo_original>
// kernel: tpu_custom_call.1
$region0: #{tpu_custom_call.1}
  #allocation0 [shape = 'u32[]', space=smem, size = 0x4, offset = 0x4, fixed_abs, tag = 'smem constant byte address 0x4 - core index']
  #allocation1 [shape = 'u32[144,128]{1,0:T(1,128)}', space=vmem, size = 0x12000, scoped, tag = 'internal scratch']
  %s0 = inlined_call_operand.hbm [shape: f32[8,8], index: 0, kind: input, shape index: {}]
  %s1 = inlined_call_operand.hbm [shape: f32[8,16], index: 1, kind: input, shape index: {}]
  %s2 = inlined_call_operand.vmem [shape: f32[8,1], index: 2, kind: output, shape index: {}]
  %s3 = sld [smem:[#allocation0]]
  $region26: #{tpu_custom_call.1} parent=0
    _
  %s5 = ssub.s32 1, %s3
  %s6 = scalar_select 0, %s5, %s3
  $region1: #{tpu_custom_call.1} parent=0
    #allocation2 [shape = 'u8[4096]{0}', space=vmem, size = 0x1000, scoped, tag = 'input window, operand 0, single buffered']
    #allocation3 [shape = 's32[1]{0}', space=sflag, size = 0x4, scoped, tag = 'scoped memory for tpu_custom_call.1']
    #allocation4 [shape = 'u8[4096]{0}', space=vmem, size = 0x1000, scoped, tag = 'input window, operand 1, single buffered']
    #allocation5 [shape = 's32[1]{0}', space=sflag, size = 0x4, scoped, tag = 'scoped memory for tpu_custom_call.1']
    %7 = vsyncpa [#allocation3], 0
    %8 = vsyncpa [#allocation5], 0
    // Predicated region
    $region2: #{tpu_custom_call.1} parent=1 // pred_check
      _
    $region3: #{tpu_custom_call.1} parent=1 // pred_check_branch
      %10 = sbr.rel (0) target = $region5
    $region4: #{tpu_custom_call.1} parent=1 // pred_region
      %s12 = ssub.s32 128, 128
      %13 = vsyncadd [#allocation3], %s12
      %s15 = sshll.u32 [#allocation2], 4
      %s16 = int_to_ptr.vmem [resolvable:$true] %s15
      %18 = dma.hbm_to_vmem [thread:$0]  %s0, 128, %s16, [#allocation3]
    $region5: #{tpu_custom_call.1} parent=1 // pred_fallthru
      _
    // Predicated region
    $region6: #{tpu_custom_call.1} parent=1 // pred_check
      _
    $region7: #{tpu_custom_call.1} parent=1 // pred_check_branch
      %20 = sbr.rel (0) target = $region9
    $region8: #{tpu_custom_call.1} parent=1 // pred_region
      %s22 = ssub.s32 128, 128
      %23 = vsyncadd [#allocation5], %s22
      %s25 = sshll.u32 [#allocation4], 4
      %s26 = int_to_ptr.vmem [resolvable:$true] %s25
      %28 = dma.hbm_to_vmem [thread:$0]  %s1, 128, %s26, [#allocation5]
    $region9: #{tpu_custom_call.1} parent=1 // pred_fallthru
      _
    // Predicated region
    $region10: #{tpu_custom_call.1} parent=1 // pred_check
      _
    $region11: #{tpu_custom_call.1} parent=1 // pred_check_branch
      %30 = sbr.rel (0) target = $region13
    $region12: #{tpu_custom_call.1} parent=1 // pred_region
      %31 = dma.done [#allocation3], 128
    $region13: #{tpu_custom_call.1} parent=1 // pred_fallthru
      _
    // Predicated region
    $region14: #{tpu_custom_call.1} parent=1 // pred_check
      _
    $region15: #{tpu_custom_call.1} parent=1 // pred_check_branch
      %33 = sbr.rel (0) target = $region17
    $region16: #{tpu_custom_call.1} parent=1 // pred_region
      %34 = dma.done [#allocation5], 128
    $region17: #{tpu_custom_call.1} parent=1 // pred_fallthru
      _
    %v35 = vld [vmem:[#allocation2] sm:$0xff]
    %v36 = vld [vmem:[#allocation4] sm:$0xff]
    %v37 = vmin.f32 %v35, 0.0
    %v38 = vand.u32 2147483647, %v35
    %v39 = vsub.f32 0.0, %v38
    %v40 = vmul.f32 %v39, 1.442695
    %v41 = vpow.pop %v40
    %v42 = vadd.f32 %v41, 1.0
    %v43 = vlog2.pop %v42
    %v44 = vmul.f32 %v43, 0.6931472
    %v45 = vmul.f32 -0.5, %v41
    %v46 = vadd.f32 %v45, 1.0
    %v47 = vmul.f32 %v46, %v41
    %v48 = vand.u32 2147483647, %v41
    %vm49 = vcmp.lt.f32.partialorder %v48, 0.0004427343
    %v50 = vsel %vm49, %v47, %v44
    %v51 = vsub.f32 %v37, %v50
    %vm52 = vcmp.ne.f32.partialorder %v51, %v51
    %v53 = vsel %vm52, 0.0, %v51
    %vm54 = vcmp.eq.f32.partialorder %v53, -inf
    %v55 = vsel %vm54, -3.4028235e+38, %v53
    %vm56 = vcmp.eq.f32.partialorder %v38, inf
    %vm57 = vmxor %vm56, 1
    %v58 = vsel %vm57, 1, 0
    %v59 = vcvt.s32.f32 %v58
    %vm60 = vcmask 64512
    %v61 = vsel %vm60, %v59, 0.0
    %62 = vadd.xlane.f32.xlu0 %v61
    %v63 = vpop.xlane.xlu0 %62
    %v64 = vrcp.pop %v63
    %v65 = vmul.f32 %v63, %v64
    %v66 = vsub.f32 2.0, %v65
    %v67 = vmul.f32 %v64, %v66
    %v68 = vsel %vm60, %v55, 0.0
    %69 = vadd.xlane.f32.xlu0 %v68
    %v70 = vpop.xlane.xlu0 %69
    %v71 = vmul.f32 %v70, %v67
    %v72 = vmax.f32 %v36, 0.0
    %v73 = vand.u32 2147483647, %v36
    %v74 = vsub.f32 0.0, %v73
    %v75 = vmul.f32 %v74, 1.442695
    %v76 = vpow.pop %v75
    %v77 = vadd.f32 %v76, 1.0
    %v78 = vlog2.pop %v77
    %v79 = vmul.f32 %v78, 0.6931472
    %v80 = vmul.f32 -0.5, %v76
    %v81 = vadd.f32 %v80, 1.0
    %v82 = vmul.f32 %v81, %v76
    %v83 = vand.u32 2147483647, %v76
    %vm84 = vcmp.lt.f32.partialorder %v83, 0.0004427343
    %v85 = vsel %vm84, %v82, %v79
    %v86 = vadd.f32 %v72, %v85
    %vm87 = vcmask 130048
    %v88 = vsel %vm87, %v86, 0.0
    %89 = vadd.xlane.f32.xlu0 %v88
    %v90 = vpop.xlane.xlu0 %89
    %v91 = vmul.f32 %v90, 0.0625
    %v92 = vsub.f32 %v91, %v71
    %vm93 = vcmask 7168
    %94 = vst.msk [vmem:[%s2] sm:$0xff] %vm93, %v92
    // Predicated region
    $region18: #{tpu_custom_call.1} parent=1 // pred_check
      _
    $region19: #{tpu_custom_call.1} parent=1 // pred_check_branch
      %96 = sbr.rel (0) target = $region21
    $region20: #{tpu_custom_call.1} parent=1 // pred_region
      _
    $region21: #{tpu_custom_call.1} parent=1 // pred_fallthru
      _
    // Predicated region
    $region22: #{tpu_custom_call.1} parent=1 // pred_check
      _
    $region23: #{tpu_custom_call.1} parent=1 // pred_check_branch
      %98 = sbr.rel (0) target = $region25
    $region24: #{tpu_custom_call.1} parent=1 // pred_region
      _
    $region25: #{tpu_custom_call.1} parent=1 // pred_fallthru
      _
    %99 = vsyncpa [#allocation3], 1
    %100 = vsyncpa [#allocation5], 1

</llo_original>
